<compile_context>
chip_gen: v5e
topology: v5e:2x2
jax: 0.10.0
libtpu: 0.0.40
codegen_flags: <defaults>
</compile_context>

<pallas_src>
import math
import warnings
from collections import OrderedDict
from functools import partial

import jax
import jax.numpy as jnp
from jax.experimental import pallas as pl
from jax.experimental.pallas import tpu as pltpu

# Donation is a perf hint; if XLA ever declines it the run is still correct,
# so silence only that advisory warning to keep the run output clean.
warnings.filterwarnings("ignore", message="Some donated buffers were not usable")


# ----------------------------------------------------------------------------
# StyleGAN2 (1024x1024, channel_multiplier=2) conv dimension table.
# Sum of in-channels over the 17 modulated convs == 6048, matching the module.
# ----------------------------------------------------------------------------
def get_stylegan_conv_dimensions(img_size=1024):
    channels = {4: 512, 8: 512, 16: 512, 32: 512, 64: 512,
                128: 256, 256: 128, 512: 64, 1024: 32}
    dims = [(channels[4], channels[4])]          # 4x4 conv1
    in_ch = channels[4]
    log_size = int(math.log2(img_size))
    for i in range(3, log_size + 1):             # resolutions 8 .. img_size
        out_ch = channels[2 ** i]
        dims.append((in_ch, out_ch))             # conv0 (upsample)
        dims.append((out_ch, out_ch))            # conv1
        in_ch = out_ch
    return dims


def split_stylespace(style_space, img_size=1024):
    # kept only for the pure-JAX reference check
    prev = 0
    result = []
    for cin, _ in get_stylegan_conv_dimensions(img_size):
        result.append(style_space[:, prev:prev + cin])
        prev += cin
    return result


def to_dict_input(deltas, img_size=1024):
    dict_input = OrderedDict()
    start_idx = 0
    for idx, (in_d, _) in enumerate(get_stylegan_conv_dimensions(img_size)):
        dict_input[f'conv_{idx}'] = {'in': deltas[:, start_idx:start_idx + in_d]}
        start_idx += in_d
    return dict_input


# ----------------------------------------------------------------------------
# Fused Pallas kernel (no grid, full-array VMEM refs):
#     out_i = st_i + delta_slab[:, off_i : off_i + C_i]      for i in 0..16
# delta_slab is (1, 6272) with every per-conv segment starting at a
# 128-lane-aligned offset; the (1, C_i) slice broadcasts over the batch.
# ----------------------------------------------------------------------------
def _build_fused_shift(conv_in_dims, padded_offsets):
    n = len(conv_in_dims)

    def kernel(d_ref, *refs):
        st_refs = refs[:n]
        out_refs = refs[n:]
        for i in range(n):
            c = conv_in_dims[i]
            off = padded_offsets[i]
            out_refs[i][...] = st_refs[i][...] + d_ref[:, off:off + c]

    vmem = pl.BlockSpec(memory_space=pltpu.MemorySpace.VMEM)

    def call(delta_slab, styles):
        out_shape = tuple(jax.ShapeDtypeStruct(s.shape, s.dtype) for s in styles)
        return pl.pallas_call(
            kernel,
            out_shape=out_shape,
            in_specs=[vmem] * (1 + n),
            out_specs=tuple(vmem for _ in range(n)),
            # style input i+1 aliases output i (delta slab is input 0)
            input_output_aliases={i + 1: i for i in range(n)},
        )(delta_slab, *styles)

    # donate the style tuple so the aliased outputs really reuse the buffers
    return jax.jit(call, donate_argnums=(1,))


# ----------------------------------------------------------------------------
# JAX/Pallas port of SparsedModel.
# ----------------------------------------------------------------------------
class SparsedModelPallas:
    TOTAL_DIM = 6048
    LANE = 128

    def __init__(self, deltas=None):
        self.convid_to_st = dict(
            [(0, 0), (1, 2), (2, 3), (3, 5), (4, 6), (5, 8), (6, 9), (7, 11),
             (8, 12), (9, 14), (10, 15), (11, 17), (12, 18), (13, 20),
             (14, 21), (15, 23), (16, 24)])
        self.s_to_conv_id = {v: k for k, v in self.convid_to_st.items()}
        self.input_keys = sorted(self.s_to_conv_id.keys())
        self.conv_dims = get_stylegan_conv_dimensions(1024)
        self.conv_in_dims = [cin for cin, _ in self.conv_dims]

        if deltas is None:
            deltas = jnp.zeros((1, self.TOTAL_DIM), jnp.float32)
        self.deltas = deltas
        self.grad_mask = jnp.ones((1, self.TOTAL_DIM), jnp.float32)

        # Precompute (deltas * grad_mask) ONCE (batch-independent parameter
        # data) and pack it into a single slab whose per-conv segments are
        # padded to 128-lane-aligned offsets, so every in-kernel static slice
        # is aligned and the kernel sees exactly one delta input stream.
        masked = self.deltas * self.grad_mask
        segs, padded_offsets = [], []
        raw, off = 0, 0
        for cin in self.conv_in_dims:
            seg = masked[:, raw:raw + cin]
            pad_c = -(-cin // self.LANE) * self.LANE
            if pad_c != cin:
                seg = jnp.pad(seg, ((0, 0), (0, pad_c - cin)))
            segs.append(seg)
            padded_offsets.append(off)
            raw += cin
            off += pad_c
        self.delta_slab = jnp.concatenate(segs, axis=1)   # (1, 6272), 128-aligned
        self.padded_offsets = padded_offsets

        self._fused_shift = _build_fused_shift(self.conv_in_dims, self.padded_offsets)

    def forward(self, style_space):
        # Gather the 17 modulated-conv style vectors (pure list indexing) and
        # shift them in one fused, grid-less Pallas call.  The 17 style input
        # buffers are donated and overwritten in place by the shifted styles.
        conv_styles = tuple(style_space[i] for i in self.input_keys)
        shifted = self._fused_shift(self.delta_slab, conv_styles)
        # re-interleave with untouched (toRGB) entries
        answer = [shifted[self.s_to_conv_id[i]] if i in self.input_keys
                  else style_space[i]
                  for i in range(len(style_space))]
        return answer, to_dict_input(self.deltas)

    def offsets(self):
        return to_dict_input(self.deltas)

    # TODO(synk): pruned_forward / pruned_offsets (argsort-based top-k pruning
    # of deltas) are host-side parameter surgery, not a kernel hot path; left
    # out of the Pallas port.


# ----------------------------------------------------------------------------
# Example / correctness check.
# ----------------------------------------------------------------------------
def _build_style_space(key, batch):
    """26-entry StyleSpace list (17 conv styles + 9 toRGB styles)."""
    conv_in_dims = [cin for cin, _ in get_stylegan_conv_dimensions(1024)]
    torgb_dims = [512, 512, 512, 512, 512, 256, 128, 64, 32]
    convid_to_st = dict(
        [(0, 0), (1, 2), (2, 3), (3, 5), (4, 6), (5, 8), (6, 9), (7, 11),
         (8, 12), (9, 14), (10, 15), (11, 17), (12, 18), (13, 20),
         (14, 21), (15, 23), (16, 24)])
    st_to_convid = {v: k for k, v in convid_to_st.items()}
    n_styles = 26
    dims = []
    torgb_it = iter(torgb_dims)
    for i in range(n_styles):
        if i in st_to_convid:
            dims.append(conv_in_dims[st_to_convid[i]])
        else:
            dims.append(next(torgb_it))
    keys = jax.random.split(key, n_styles)
    return [jax.random.normal(keys[i], (batch, dims[i]), jnp.float32)
            for i in range(n_styles)]


if __name__ == "__main__":
    key = jax.random.PRNGKey(0)
    k_styles, k_deltas = jax.random.split(key)

    batch = 2
    style_space = _build_style_space(k_styles, batch)

    # module __init__ uses zeros; use a deterministic non-zero parameter so the
    # kernel actually shifts the styles (shape is exactly (1, 6048)).
    deltas = 0.01 * jax.random.normal(k_deltas, (1, 6048), jnp.float32)

    model = SparsedModelPallas(deltas=deltas)

    # Pure-JAX reference, computed BEFORE forward() because the 17 conv style
    # buffers are donated (aliased to the kernel outputs) inside forward().
    st_ref = jnp.concatenate([style_space[i] for i in model.input_keys], axis=1)
    st_shift_ref = st_ref + model.deltas * model.grad_mask
    split_ref = split_stylespace(st_shift_ref)
    ref_answer = [split_ref[model.s_to_conv_id[i]] if i in model.input_keys
                  else style_space[i]
                  for i in range(len(style_space))]
    ref_answer = [jax.block_until_ready(r) for r in ref_answer]

    answer, offsets = model.forward(style_space)
    answer = [jax.block_until_ready(a) for a in answer]

    ok = all(a.shape == r.shape and bool(jnp.allclose(a, r, atol=1e-6))
             for a, r in zip(answer, ref_answer))
    ok = ok and len(offsets) == 17 and offsets['conv_0']['in'].shape == (1, 512)

    if ok:
        print("KERNEL_OK")
    else:
        print("KERNEL_MISMATCH")
</pallas_src>

<mosaic_0001>
module attributes {stable_mosaic.version = 11 : i64} {
  func.func @kernel(%arg0: memref<1x6272xf32, #tpu.memory_space<vmem>>, %arg1: memref<2x512xf32, #tpu.memory_space<vmem>>, %arg2: memref<2x512xf32, #tpu.memory_space<vmem>>, %arg3: memref<2x512xf32, #tpu.memory_space<vmem>>, %arg4: memref<2x512xf32, #tpu.memory_space<vmem>>, %arg5: memref<2x512xf32, #tpu.memory_space<vmem>>, %arg6: memref<2x512xf32, #tpu.memory_space<vmem>>, %arg7: memref<2x512xf32, #tpu.memory_space<vmem>>, %arg8: memref<2x512xf32, #tpu.memory_space<vmem>>, %arg9: memref<2x512xf32, #tpu.memory_space<vmem>>, %arg10: memref<2x512xf32, #tpu.memory_space<vmem>>, %arg11: memref<2x256xf32, #tpu.memory_space<vmem>>, %arg12: memref<2x256xf32, #tpu.memory_space<vmem>>, %arg13: memref<2x128xf32, #tpu.memory_space<vmem>>, %arg14: memref<2x128xf32, #tpu.memory_space<vmem>>, %arg15: memref<2x64xf32, #tpu.memory_space<vmem>>, %arg16: memref<2x64xf32, #tpu.memory_space<vmem>>, %arg17: memref<2x32xf32, #tpu.memory_space<vmem>>, %arg18: memref<2x512xf32, #tpu.memory_space<vmem>>, %arg19: memref<2x512xf32, #tpu.memory_space<vmem>>, %arg20: memref<2x512xf32, #tpu.memory_space<vmem>>, %arg21: memref<2x512xf32, #tpu.memory_space<vmem>>, %arg22: memref<2x512xf32, #tpu.memory_space<vmem>>, %arg23: memref<2x512xf32, #tpu.memory_space<vmem>>, %arg24: memref<2x512xf32, #tpu.memory_space<vmem>>, %arg25: memref<2x512xf32, #tpu.memory_space<vmem>>, %arg26: memref<2x512xf32, #tpu.memory_space<vmem>>, %arg27: memref<2x512xf32, #tpu.memory_space<vmem>>, %arg28: memref<2x256xf32, #tpu.memory_space<vmem>>, %arg29: memref<2x256xf32, #tpu.memory_space<vmem>>, %arg30: memref<2x128xf32, #tpu.memory_space<vmem>>, %arg31: memref<2x128xf32, #tpu.memory_space<vmem>>, %arg32: memref<2x64xf32, #tpu.memory_space<vmem>>, %arg33: memref<2x64xf32, #tpu.memory_space<vmem>>, %arg34: memref<2x32xf32, #tpu.memory_space<vmem>>) attributes {dimension_semantics = [], scalar_prefetch = 0 : i64, scratch_operands = 0 : i64, tpu.core_type = #tpu.core_type<tc>} {
    %c0 = arith.constant 0 : index
    %c0_0 = arith.constant 0 : index
    %0 = vector.load %arg1[%c0, %c0_0] : memref<2x512xf32, #tpu.memory_space<vmem>>, vector<2x512xf32>
    %c0_1 = arith.constant 0 : index
    %c0_2 = arith.constant 0 : index
    %1 = vector.load %arg0[%c0_1, %c0_2] : memref<1x6272xf32, #tpu.memory_space<vmem>>, vector<1x512xf32>
    %2 = vector.broadcast %1 : vector<1x512xf32> to vector<2x512xf32>
    %3 = arith.addf %0, %2 : vector<2x512xf32>
    %c0_3 = arith.constant 0 : index
    %c0_4 = arith.constant 0 : index
    %4 = vector.load %arg18[%c0_3, %c0_4] : memref<2x512xf32, #tpu.memory_space<vmem>>, vector<2x512xf32>
    tpu.vector_store %arg18[%c0_3, %c0_4], %3 {strides = array<i32>} : memref<2x512xf32, #tpu.memory_space<vmem>>, vector<2x512xf32>,
    %c0_5 = arith.constant 0 : index
    %c0_6 = arith.constant 0 : index
    %5 = vector.load %arg2[%c0_5, %c0_6] : memref<2x512xf32, #tpu.memory_space<vmem>>, vector<2x512xf32>
    %c0_7 = arith.constant 0 : index
    %c512 = arith.constant 512 : index
    %6 = vector.load %arg0[%c0_7, %c512] : memref<1x6272xf32, #tpu.memory_space<vmem>>, vector<1x512xf32>
    %7 = vector.broadcast %6 : vector<1x512xf32> to vector<2x512xf32>
    %8 = arith.addf %5, %7 : vector<2x512xf32>
    %c0_8 = arith.constant 0 : index
    %c0_9 = arith.constant 0 : index
    %9 = vector.load %arg19[%c0_8, %c0_9] : memref<2x512xf32, #tpu.memory_space<vmem>>, vector<2x512xf32>
    tpu.vector_store %arg19[%c0_8, %c0_9], %8 {strides = array<i32>} : memref<2x512xf32, #tpu.memory_space<vmem>>, vector<2x512xf32>,
    %c0_10 = arith.constant 0 : index
    %c0_11 = arith.constant 0 : index
    %10 = vector.load %arg3[%c0_10, %c0_11] : memref<2x512xf32, #tpu.memory_space<vmem>>, vector<2x512xf32>
    %c0_12 = arith.constant 0 : index
    %c1024 = arith.constant 1024 : index
    %11 = vector.load %arg0[%c0_12, %c1024] : memref<1x6272xf32, #tpu.memory_space<vmem>>, vector<1x512xf32>
    %12 = vector.broadcast %11 : vector<1x512xf32> to vector<2x512xf32>
    %13 = arith.addf %10, %12 : vector<2x512xf32>
    %c0_13 = arith.constant 0 : index
    %c0_14 = arith.constant 0 : index
    %14 = vector.load %arg20[%c0_13, %c0_14] : memref<2x512xf32, #tpu.memory_space<vmem>>, vector<2x512xf32>
    tpu.vector_store %arg20[%c0_13, %c0_14], %13 {strides = array<i32>} : memref<2x512xf32, #tpu.memory_space<vmem>>, vector<2x512xf32>,
    %c0_15 = arith.constant 0 : index
    %c0_16 = arith.constant 0 : index
    %15 = vector.load %arg4[%c0_15, %c0_16] : memref<2x512xf32, #tpu.memory_space<vmem>>, vector<2x512xf32>
    %c0_17 = arith.constant 0 : index
    %c1536 = arith.constant 1536 : index
    %16 = vector.load %arg0[%c0_17, %c1536] : memref<1x6272xf32, #tpu.memory_space<vmem>>, vector<1x512xf32>
    %17 = vector.broadcast %16 : vector<1x512xf32> to vector<2x512xf32>
    %18 = arith.addf %15, %17 : vector<2x512xf32>
    %c0_18 = arith.constant 0 : index
    %c0_19 = arith.constant 0 : index
    %19 = vector.load %arg21[%c0_18, %c0_19] : memref<2x512xf32, #tpu.memory_space<vmem>>, vector<2x512xf32>
    tpu.vector_store %arg21[%c0_18, %c0_19], %18 {strides = array<i32>} : memref<2x512xf32, #tpu.memory_space<vmem>>, vector<2x512xf32>,
    %c0_20 = arith.constant 0 : index
    %c0_21 = arith.constant 0 : index
    %20 = vector.load %arg5[%c0_20, %c0_21] : memref<2x512xf32, #tpu.memory_space<vmem>>, vector<2x512xf32>
    %c0_22 = arith.constant 0 : index
    %c2048 = arith.constant 2048 : index
    %21 = vector.load %arg0[%c0_22, %c2048] : memref<1x6272xf32, #tpu.memory_space<vmem>>, vector<1x512xf32>
    %22 = vector.broadcast %21 : vector<1x512xf32> to vector<2x512xf32>
    %23 = arith.addf %20, %22 : vector<2x512xf32>
    %c0_23 = arith.constant 0 : index
    %c0_24 = arith.constant 0 : index
    %24 = vector.load %arg22[%c0_23, %c0_24] : memref<2x512xf32, #tpu.memory_space<vmem>>, vector<2x512xf32>
    tpu.vector_store %arg22[%c0_23, %c0_24], %23 {strides = array<i32>} : memref<2x512xf32, #tpu.memory_space<vmem>>, vector<2x512xf32>,
    %c0_25 = arith.constant 0 : index
    %c0_26 = arith.constant 0 : index
    %25 = vector.load %arg6[%c0_25, %c0_26] : memref<2x512xf32, #tpu.memory_space<vmem>>, vector<2x512xf32>
    %c0_27 = arith.constant 0 : index
    %c2560 = arith.constant 2560 : index
    %26 = vector.load %arg0[%c0_27, %c2560] : memref<1x6272xf32, #tpu.memory_space<vmem>>, vector<1x512xf32>
    %27 = vector.broadcast %26 : vector<1x512xf32> to vector<2x512xf32>
    %28 = arith.addf %25, %27 : vector<2x512xf32>
    %c0_28 = arith.constant 0 : index
    %c0_29 = arith.constant 0 : index
    %29 = vector.load %arg23[%c0_28, %c0_29] : memref<2x512xf32, #tpu.memory_space<vmem>>, vector<2x512xf32>
    tpu.vector_store %arg23[%c0_28, %c0_29], %28 {strides = array<i32>} : memref<2x512xf32, #tpu.memory_space<vmem>>, vector<2x512xf32>,
    %c0_30 = arith.constant 0 : index
    %c0_31 = arith.constant 0 : index
    %30 = vector.load %arg7[%c0_30, %c0_31] : memref<2x512xf32, #tpu.memory_space<vmem>>, vector<2x512xf32>
    %c0_32 = arith.constant 0 : index
    %c3072 = arith.constant 3072 : index
    %31 = vector.load %arg0[%c0_32, %c3072] : memref<1x6272xf32, #tpu.memory_space<vmem>>, vector<1x512xf32>
    %32 = vector.broadcast %31 : vector<1x512xf32> to vector<2x512xf32>
    %33 = arith.addf %30, %32 : vector<2x512xf32>
    %c0_33 = arith.constant 0 : index
    %c0_34 = arith.constant 0 : index
    %34 = vector.load %arg24[%c0_33, %c0_34] : memref<2x512xf32, #tpu.memory_space<vmem>>, vector<2x512xf32>
    tpu.vector_store %arg24[%c0_33, %c0_34], %33 {strides = array<i32>} : memref<2x512xf32, #tpu.memory_space<vmem>>, vector<2x512xf32>,
    %c0_35 = arith.constant 0 : index
    %c0_36 = arith.constant 0 : index
    %35 = vector.load %arg8[%c0_35, %c0_36] : memref<2x512xf32, #tpu.memory_space<vmem>>, vector<2x512xf32>
    %c0_37 = arith.constant 0 : index
    %c3584 = arith.constant 3584 : index
    %36 = vector.load %arg0[%c0_37, %c3584] : memref<1x6272xf32, #tpu.memory_space<vmem>>, vector<1x512xf32>
    %37 = vector.broadcast %36 : vector<1x512xf32> to vector<2x512xf32>
    %38 = arith.addf %35, %37 : vector<2x512xf32>
    %c0_38 = arith.constant 0 : index
    %c0_39 = arith.constant 0 : index
    %39 = vector.load %arg25[%c0_38, %c0_39] : memref<2x512xf32, #tpu.memory_space<vmem>>, vector<2x512xf32>
    tpu.vector_store %arg25[%c0_38, %c0_39], %38 {strides = array<i32>} : memref<2x512xf32, #tpu.memory_space<vmem>>, vector<2x512xf32>,
    %c0_40 = arith.constant 0 : index
    %c0_41 = arith.constant 0 : index
    %40 = vector.load %arg9[%c0_40, %c0_41] : memref<2x512xf32, #tpu.memory_space<vmem>>, vector<2x512xf32>
    %c0_42 = arith.constant 0 : index
    %c4096 = arith.constant 4096 : index
    %41 = vector.load %arg0[%c0_42, %c4096] : memref<1x6272xf32, #tpu.memory_space<vmem>>, vector<1x512xf32>
    %42 = vector.broadcast %41 : vector<1x512xf32> to vector<2x512xf32>
    %43 = arith.addf %40, %42 : vector<2x512xf32>
    %c0_43 = arith.constant 0 : index
    %c0_44 = arith.constant 0 : index
    %44 = vector.load %arg26[%c0_43, %c0_44] : memref<2x512xf32, #tpu.memory_space<vmem>>, vector<2x512xf32>
    tpu.vector_store %arg26[%c0_43, %c0_44], %43 {strides = array<i32>} : memref<2x512xf32, #tpu.memory_space<vmem>>, vector<2x512xf32>,
    %c0_45 = arith.constant 0 : index
    %c0_46 = arith.constant 0 : index
    %45 = vector.load %arg10[%c0_45, %c0_46] : memref<2x512xf32, #tpu.memory_space<vmem>>, vector<2x512xf32>
    %c0_47 = arith.constant 0 : index
    %c4608 = arith.constant 4608 : index
    %46 = vector.load %arg0[%c0_47, %c4608] : memref<1x6272xf32, #tpu.memory_space<vmem>>, vector<1x512xf32>
    %47 = vector.broadcast %46 : vector<1x512xf32> to vector<2x512xf32>
    %48 = arith.addf %45, %47 : vector<2x512xf32>
    %c0_48 = arith.constant 0 : index
    %c0_49 = arith.constant 0 : index
    %49 = vector.load %arg27[%c0_48, %c0_49] : memref<2x512xf32, #tpu.memory_space<vmem>>, vector<2x512xf32>
    tpu.vector_store %arg27[%c0_48, %c0_49], %48 {strides = array<i32>} : memref<2x512xf32, #tpu.memory_space<vmem>>, vector<2x512xf32>,
    %c0_50 = arith.constant 0 : index
    %c0_51 = arith.constant 0 : index
    %50 = vector.load %arg11[%c0_50, %c0_51] : memref<2x256xf32, #tpu.memory_space<vmem>>, vector<2x256xf32>
    %c0_52 = arith.constant 0 : index
    %c5120 = arith.constant 5120 : index
    %51 = vector.load %arg0[%c0_52, %c5120] : memref<1x6272xf32, #tpu.memory_space<vmem>>, vector<1x256xf32>
    %52 = vector.broadcast %51 : vector<1x256xf32> to vector<2x256xf32>
    %53 = arith.addf %50, %52 : vector<2x256xf32>
    %c0_53 = arith.constant 0 : index
    %c0_54 = arith.constant 0 : index
    %54 = vector.load %arg28[%c0_53, %c0_54] : memref<2x256xf32, #tpu.memory_space<vmem>>, vector<2x256xf32>
    tpu.vector_store %arg28[%c0_53, %c0_54], %53 {strides = array<i32>} : memref<2x256xf32, #tpu.memory_space<vmem>>, vector<2x256xf32>,
    %c0_55 = arith.constant 0 : index
    %c0_56 = arith.constant 0 : index
    %55 = vector.load %arg12[%c0_55, %c0_56] : memref<2x256xf32, #tpu.memory_space<vmem>>, vector<2x256xf32>
    %c0_57 = arith.constant 0 : index
    %c5376 = arith.constant 5376 : index
    %56 = vector.load %arg0[%c0_57, %c5376] : memref<1x6272xf32, #tpu.memory_space<vmem>>, vector<1x256xf32>
    %57 = vector.broadcast %56 : vector<1x256xf32> to vector<2x256xf32>
    %58 = arith.addf %55, %57 : vector<2x256xf32>
    %c0_58 = arith.constant 0 : index
    %c0_59 = arith.constant 0 : index
    %59 = vector.load %arg29[%c0_58, %c0_59] : memref<2x256xf32, #tpu.memory_space<vmem>>, vector<2x256xf32>
    tpu.vector_store %arg29[%c0_58, %c0_59], %58 {strides = array<i32>} : memref<2x256xf32, #tpu.memory_space<vmem>>, vector<2x256xf32>,
    %c0_60 = arith.constant 0 : index
    %c0_61 = arith.constant 0 : index
    %60 = vector.load %arg13[%c0_60, %c0_61] : memref<2x128xf32, #tpu.memory_space<vmem>>, vector<2x128xf32>
    %c0_62 = arith.constant 0 : index
    %c5632 = arith.constant 5632 : index
    %61 = vector.load %arg0[%c0_62, %c5632] : memref<1x6272xf32, #tpu.memory_space<vmem>>, vector<1x128xf32>
    %62 = vector.broadcast %61 : vector<1x128xf32> to vector<2x128xf32>
    %63 = arith.addf %60, %62 : vector<2x128xf32>
    %c0_63 = arith.constant 0 : index
    %c0_64 = arith.constant 0 : index
    %64 = vector.load %arg30[%c0_63, %c0_64] : memref<2x128xf32, #tpu.memory_space<vmem>>, vector<2x128xf32>
    tpu.vector_store %arg30[%c0_63, %c0_64], %63 {strides = array<i32>} : memref<2x128xf32, #tpu.memory_space<vmem>>, vector<2x128xf32>,
    %c0_65 = arith.constant 0 : index
    %c0_66 = arith.constant 0 : index
    %65 = vector.load %arg14[%c0_65, %c0_66] : memref<2x128xf32, #tpu.memory_space<vmem>>, vector<2x128xf32>
    %c0_67 = arith.constant 0 : index
    %c5760 = arith.constant 5760 : index
    %66 = vector.load %arg0[%c0_67, %c5760] : memref<1x6272xf32, #tpu.memory_space<vmem>>, vector<1x128xf32>
    %67 = vector.broadcast %66 : vector<1x128xf32> to vector<2x128xf32>
    %68 = arith.addf %65, %67 : vector<2x128xf32>
    %c0_68 = arith.constant 0 : index
    %c0_69 = arith.constant 0 : index
    %69 = vector.load %arg31[%c0_68, %c0_69] : memref<2x128xf32, #tpu.memory_space<vmem>>, vector<2x128xf32>
    tpu.vector_store %arg31[%c0_68, %c0_69], %68 {strides = array<i32>} : memref<2x128xf32, #tpu.memory_space<vmem>>, vector<2x128xf32>,
    %c0_70 = arith.constant 0 : index
    %c0_71 = arith.constant 0 : index
    %70 = vector.load %arg15[%c0_70, %c0_71] : memref<2x64xf32, #tpu.memory_space<vmem>>, vector<2x64xf32>
    %c0_72 = arith.constant 0 : index
    %c5888 = arith.constant 5888 : index
    %71 = vector.load %arg0[%c0_72, %c5888] : memref<1x6272xf32, #tpu.memory_space<vmem>>, vector<1x64xf32>
    %72 = vector.broadcast %71 : vector<1x64xf32> to vector<2x64xf32>
    %73 = arith.addf %70, %72 : vector<2x64xf32>
    %c0_73 = arith.constant 0 : index
    %c0_74 = arith.constant 0 : index
    %74 = vector.load %arg32[%c0_73, %c0_74] : memref<2x64xf32, #tpu.memory_space<vmem>>, vector<2x64xf32>
    tpu.vector_store %arg32[%c0_73, %c0_74], %73 {strides = array<i32>} : memref<2x64xf32, #tpu.memory_space<vmem>>, vector<2x64xf32>,
    %c0_75 = arith.constant 0 : index
    %c0_76 = arith.constant 0 : index
    %75 = vector.load %arg16[%c0_75, %c0_76] : memref<2x64xf32, #tpu.memory_space<vmem>>, vector<2x64xf32>
    %c0_77 = arith.constant 0 : index
    %c6016 = arith.constant 6016 : index
    %76 = vector.load %arg0[%c0_77, %c6016] : memref<1x6272xf32, #tpu.memory_space<vmem>>, vector<1x64xf32>
    %77 = vector.broadcast %76 : vector<1x64xf32> to vector<2x64xf32>
    %78 = arith.addf %75, %77 : vector<2x64xf32>
    %c0_78 = arith.constant 0 : index
    %c0_79 = arith.constant 0 : index
    %79 = vector.load %arg33[%c0_78, %c0_79] : memref<2x64xf32, #tpu.memory_space<vmem>>, vector<2x64xf32>
    tpu.vector_store %arg33[%c0_78, %c0_79], %78 {strides = array<i32>} : memref<2x64xf32, #tpu.memory_space<vmem>>, vector<2x64xf32>,
    %c0_80 = arith.constant 0 : index
    %c0_81 = arith.constant 0 : index
    %80 = vector.load %arg17[%c0_80, %c0_81] : memref<2x32xf32, #tpu.memory_space<vmem>>, vector<2x32xf32>
    %c0_82 = arith.constant 0 : index
    %c6144 = arith.constant 6144 : index
    %81 = vector.load %arg0[%c0_82, %c6144] : memref<1x6272xf32, #tpu.memory_space<vmem>>, vector<1x32xf32>
    %82 = vector.broadcast %81 : vector<1x32xf32> to vector<2x32xf32>
    %83 = arith.addf %80, %82 : vector<2x32xf32>
    %c0_83 = arith.constant 0 : index
    %c0_84 = arith.constant 0 : index
    %84 = vector.load %arg34[%c0_83, %c0_84] : memref<2x32xf32, #tpu.memory_space<vmem>>, vector<2x32xf32>
    tpu.vector_store %arg34[%c0_83, %c0_84], %83 {strides = array<i32>} : memref<2x32xf32, #tpu.memory_space<vmem>>, vector<2x32xf32>,
    return
  }
}

</mosaic_0001>

<llo_original>
// kernel: call.1
$region0: #{call.1}
  #allocation0 [shape = 'u32[]', space=smem, size = 0x4, offset = 0x4, fixed_abs, tag = 'smem constant byte address 0x4 - core index']
  #allocation1 [shape = 'u32[72,128]{1,0:T(1,128)}', space=vmem, size = 0x9000, scoped, tag = 'internal scratch']
  %s0 = inlined_call_operand.smem [shape: u32[35], index: -1, kind: input, shape index: {}]
  %s1 = sld [smem:[%s0]]
  %s2 = scalar_lea.smem %s0, 1
  %s3 = sld [smem:[%s2]]
  %s4 = scalar_lea.smem %s0, 2
  %s5 = sld [smem:[%s4]]
  %s6 = scalar_lea.smem %s0, 3
  %s7 = sld [smem:[%s6]]
  %s8 = scalar_lea.smem %s0, 4
  %s9 = sld [smem:[%s8]]
  %s10 = scalar_lea.smem %s0, 5
  %s11 = sld [smem:[%s10]]
  %s12 = scalar_lea.smem %s0, 6
  %s13 = sld [smem:[%s12]]
  %s14 = scalar_lea.smem %s0, 7
  %s15 = sld [smem:[%s14]]
  %s16 = scalar_lea.smem %s0, 8
  %s17 = sld [smem:[%s16]]
  %s18 = scalar_lea.smem %s0, 9
  %s19 = sld [smem:[%s18]]
  %s20 = scalar_lea.smem %s0, 10
  %s21 = sld [smem:[%s20]]
  %s22 = scalar_lea.smem %s0, 11
  %s23 = sld [smem:[%s22]]
  %s24 = scalar_lea.smem %s0, 12
  %s25 = sld [smem:[%s24]]
  %s26 = scalar_lea.smem %s0, 13
  %s27 = sld [smem:[%s26]]
  %s28 = scalar_lea.smem %s0, 14
  %s29 = sld [smem:[%s28]]
  %s30 = scalar_lea.smem %s0, 15
  %s31 = sld [smem:[%s30]]
  %s32 = scalar_lea.smem %s0, 16
  %s33 = sld [smem:[%s32]]
  %s34 = scalar_lea.smem %s0, 17
  %s35 = sld [smem:[%s34]]
  %s36 = scalar_lea.smem %s0, 18
  %s37 = sld [smem:[%s36]]
  %s38 = scalar_lea.smem %s0, 19
  %s39 = sld [smem:[%s38]]
  %s40 = scalar_lea.smem %s0, 20
  %s41 = sld [smem:[%s40]]
  %s42 = scalar_lea.smem %s0, 21
  %s43 = sld [smem:[%s42]]
  %s44 = scalar_lea.smem %s0, 22
  %s45 = sld [smem:[%s44]]
  %s46 = scalar_lea.smem %s0, 23
  %s47 = sld [smem:[%s46]]
  %s48 = scalar_lea.smem %s0, 24
  %s49 = sld [smem:[%s48]]
  %s50 = scalar_lea.smem %s0, 25
  %s51 = sld [smem:[%s50]]
  %s52 = scalar_lea.smem %s0, 26
  %s53 = sld [smem:[%s52]]
  %s54 = scalar_lea.smem %s0, 27
  %s55 = sld [smem:[%s54]]
  %s56 = scalar_lea.smem %s0, 28
  %s57 = sld [smem:[%s56]]
  %s58 = scalar_lea.smem %s0, 29
  %s59 = sld [smem:[%s58]]
  %s60 = scalar_lea.smem %s0, 30
  %s61 = sld [smem:[%s60]]
  %s62 = scalar_lea.smem %s0, 31
  %s63 = sld [smem:[%s62]]
  %s64 = scalar_lea.smem %s0, 32
  %s65 = sld [smem:[%s64]]
  %s66 = scalar_lea.smem %s0, 33
  %s67 = sld [smem:[%s66]]
  %s68 = scalar_lea.smem %s0, 34
  %s69 = sld [smem:[%s68]]
  %70 = xla_tuple %s37, %s39, %s41, %s43, %s45, %s47, %s49, %s51, %s53, %s55, %s57, %s59, %s61, %s63, %s65, %s67, %s69
  %s71 = sld [smem:[#allocation0]]
  $region282: #{call.1} parent=0
    _
  %s73 = ssub.s32 1, %s71
  %s74 = scalar_select 0, %s73, %s71
  $region1: #{call.1} parent=0
    #allocation2 [shape = 'u8[25088]{0}', space=vmem, size = 0x6400, scoped, tag = 'input window, operand 0, single buffered']
    #allocation3 [shape = 's32[1]{0}', space=sflag, size = 0x4, scoped, tag = 'scoped memory for call.1']
    #allocation4 [shape = 's32[1]{0}', space=sflag, size = 0x4, scoped, tag = 'scoped memory for call.1']
    #allocation5 [shape = 'u8[4096]{0}', space=vmem, size = 0x1000, scoped, tag = 'input window, operand 1, single buffered']
    #allocation6 [shape = 's32[1]{0}', space=sflag, size = 0x4, scoped, tag = 'scoped memory for call.1']
    #allocation7 [shape = 'u8[4096]{0}', space=vmem, size = 0x1000, scoped, tag = 'input window, operand 2, single buffered']
    #allocation8 [shape = 'u8[4096]{0}', space=vmem, size = 0x1000, scoped, tag = 'input window, operand 3, single buffered']
    #allocation9 [shape = 's32[1]{0}', space=sflag, size = 0x4, scoped, tag = 'scoped memory for call.1']
    #allocation10 [shape = 'u8[4096]{0}', space=vmem, size = 0x1000, scoped, tag = 'input window, operand 4, single buffered']
    #allocation11 [shape = 'u8[4096]{0}', space=vmem, size = 0x1000, scoped, tag = 'input window, operand 5, single buffered']
    #allocation12 [shape = 's32[1]{0}', space=sflag, size = 0x4, scoped, tag = 'scoped memory for call.1']
    #allocation13 [shape = 'u8[4096]{0}', space=vmem, size = 0x1000, scoped, tag = 'input window, operand 6, single buffered']
    #allocation14 [shape = 'u8[4096]{0}', space=vmem, size = 0x1000, scoped, tag = 'input window, operand 7, single buffered']
    #allocation15 [shape = 's32[1]{0}', space=sflag, size = 0x4, scoped, tag = 'scoped memory for call.1']
    #allocation16 [shape = 'u8[4096]{0}', space=vmem, size = 0x1000, scoped, tag = 'input window, operand 8, single buffered']
    #allocation17 [shape = 'u8[4096]{0}', space=vmem, size = 0x1000, scoped, tag = 'input window, operand 9, single buffered']
    #allocation18 [shape = 's32[1]{0}', space=sflag, size = 0x4, scoped, tag = 'scoped memory for call.1']
    #allocation19 [shape = 'u8[4096]{0}', space=vmem, size = 0x1000, scoped, tag = 'input window, operand 10, single buffered']
    #allocation20 [shape = 'u8[2048]{0}', space=vmem, size = 0x800, scoped, tag = 'input window, operand 11, single buffered']
    #allocation21 [shape = 's32[1]{0}', space=sflag, size = 0x4, scoped, tag = 'scoped memory for call.1']
    #allocation22 [shape = 'u8[2048]{0}', space=vmem, size = 0x800, scoped, tag = 'input window, operand 12, single buffered']
    #allocation23 [shape = 'u8[1024]{0}', space=vmem, size = 0x400, scoped, tag = 'input window, operand 13, single buffered']
    #allocation24 [shape = 's32[1]{0}', space=sflag, size = 0x4, scoped, tag = 'scoped memory for call.1']
    #allocation25 [shape = 'u8[1024]{0}', space=vmem, size = 0x400, scoped, tag = 'input window, operand 14, single buffered']
    #allocation26 [shape = 'u8[1024]{0}', space=vmem, size = 0x400, scoped, tag = 'input window, operand 15, single buffered']
    #allocation27 [shape = 's32[1]{0}', space=sflag, size = 0x4, scoped, tag = 'scoped memory for call.1']
    #allocation28 [shape = 'u8[1024]{0}', space=vmem, size = 0x400, scoped, tag = 'input window, operand 16, single buffered']
    #allocation29 [shape = 'u8[1024]{0}', space=vmem, size = 0x400, scoped, tag = 'input window, operand 17, single buffered']
    #allocation30 [shape = 's32[1]{0}', space=sflag, size = 0x4, scoped, tag = 'scoped memory for call.1']
    #allocation31 [shape = 'u8[4096]{0}', space=vmem, size = 0x1000, scoped, tag = 'output window, operand 0, single buffered']
    #allocation32 [shape = 'u8[4096]{0}', space=vmem, size = 0x1000, scoped, tag = 'output window, operand 1, single buffered']
    #allocation33 [shape = 's32[1]{0}', space=sflag, size = 0x4, scoped, tag = 'scoped memory for call.1']
    #allocation34 [shape = 'u8[4096]{0}', space=vmem, size = 0x1000, scoped, tag = 'output window, operand 2, single buffered']
    #allocation35 [shape = 'u8[4096]{0}', space=vmem, size = 0x1000, scoped, tag = 'output window, operand 3, single buffered']
    #allocation36 [shape = 's32[1]{0}', space=sflag, size = 0x4, scoped, tag = 'scoped memory for call.1']
    #allocation37 [shape = 'u8[4096]{0}', space=vmem, size = 0x1000, scoped, tag = 'output window, operand 4, single buffered']
    #allocation38 [shape = 'u8[4096]{0}', space=vmem, size = 0x1000, scoped, tag = 'output window, operand 5, single buffered']
    #allocation39 [shape = 's32[1]{0}', space=sflag, size = 0x4, scoped, tag = 'scoped memory for call.1']
    #allocation40 [shape = 'u8[4096]{0}', space=vmem, size = 0x1000, scoped, tag = 'output window, operand 6, single buffered']
    #allocation41 [shape = 'u8[4096]{0}', space=vmem, size = 0x1000, scoped, tag = 'output window, operand 7, single buffered']
    #allocation42 [shape = 's32[1]{0}', space=sflag, size = 0x4, scoped, tag = 'scoped memory for call.1']
    #allocation43 [shape = 'u8[4096]{0}', space=vmem, size = 0x1000, scoped, tag = 'output window, operand 8, single buffered']
    #allocation44 [shape = 'u8[4096]{0}', space=vmem, size = 0x1000, scoped, tag = 'output window, operand 9, single buffered']
    #allocation45 [shape = 's32[1]{0}', space=sflag, size = 0x4, scoped, tag = 'scoped memory for call.1']
    #allocation46 [shape = 'u8[2048]{0}', space=vmem, size = 0x800, scoped, tag = 'output window, operand 10, single buffered']
    #allocation47 [shape = 'u8[2048]{0}', space=vmem, size = 0x800, scoped, tag = 'output window, operand 11, single buffered']
    #allocation48 [shape = 's32[1]{0}', space=sflag, size = 0x4, scoped, tag = 'scoped memory for call.1']
    #allocation49 [shape = 'u8[1024]{0}', space=vmem, size = 0x400, scoped, tag = 'output window, operand 12, single buffered']
    #allocation50 [shape = 'u8[1024]{0}', space=vmem, size = 0x400, scoped, tag = 'output window, operand 13, single buffered']
    #allocation51 [shape = 's32[1]{0}', space=sflag, size = 0x4, scoped, tag = 'scoped memory for call.1']
    #allocation52 [shape = 'u8[1024]{0}', space=vmem, size = 0x400, scoped, tag = 'output window, operand 14, single buffered']
    #allocation53 [shape = 'u8[1024]{0}', space=vmem, size = 0x400, scoped, tag = 'output window, operand 15, single buffered']
    #allocation54 [shape = 's32[1]{0}', space=sflag, size = 0x4, scoped, tag = 'scoped memory for call.1']
    #allocation55 [shape = 'u8[1024]{0}', space=vmem, size = 0x400, scoped, tag = 'output window, operand 16, single buffered']
    %75 = vsyncpa [#allocation3], 0
    %76 = vsyncpa [#allocation6], 0
    %77 = vsyncpa [#allocation9], 0
    %78 = vsyncpa [#allocation12], 0
    %79 = vsyncpa [#allocation15], 0
    %80 = vsyncpa [#allocation18], 0
    %81 = vsyncpa [#allocation21], 0
    %82 = vsyncpa [#allocation24], 0
    %83 = vsyncpa [#allocation27], 0
    %84 = vsyncpa [#allocation30], 0
    %85 = vsyncpa [#allocation4], 0
    %86 = vsyncpa [#allocation33], 0
    %87 = vsyncpa [#allocation36], 0
    %88 = vsyncpa [#allocation39], 0
    %89 = vsyncpa [#allocation42], 0
    %90 = vsyncpa [#allocation45], 0
    %91 = vsyncpa [#allocation48], 0
    %92 = vsyncpa [#allocation51], 0
    %93 = vsyncpa [#allocation54], 0
    // Predicated region
    $region2: #{call.1} parent=1 // pred_check
      _
    $region3: #{call.1} parent=1 // pred_check_branch
      %95 = sbr.rel (0) target = $region5
    $region4: #{call.1} parent=1 // pred_region
      %97 = vsyncadd [#allocation3], 0
      %s99 = sshll.u32 %s1, 4
      %s100 = int_to_ptr.hbm [resolvable:$true] %s99
      %s101 = sshll.u32 [#allocation2], 4
      %s102 = int_to_ptr.vmem [resolvable:$true] %s101
      %104 = dma.hbm_to_vmem [thread:$0]  %s100, 784, %s102, [#allocation3]
    $region5: #{call.1} parent=1 // pred_fallthru
      _
    // Predicated region
    $region6: #{call.1} parent=1 // pred_check
      _
    $region7: #{call.1} parent=1 // pred_check_branch
      %106 = sbr.rel (0) target = $region9
    $region8: #{call.1} parent=1 // pred_region
      %108 = vsyncadd [#allocation6], 0
      %s110 = sshll.u32 %s3, 4
      %s111 = int_to_ptr.hbm [resolvable:$true] %s110
      %s112 = sshll.u32 [#allocation5], 4
      %s113 = int_to_ptr.vmem [resolvable:$true] %s112
      %115 = dma.hbm_to_vmem [thread:$0]  %s111, 128, %s113, [#allocation6]
    $region9: #{call.1} parent=1 // pred_fallthru
      _
    // Predicated region
    $region10: #{call.1} parent=1 // pred_check
      _
    $region11: #{call.1} parent=1 // pred_check_branch
      %117 = sbr.rel (0) target = $region13
    $region12: #{call.1} parent=1 // pred_region
      %119 = vsyncadd [#allocation6], 0
      %s121 = sshll.u32 %s5, 4
      %s122 = int_to_ptr.hbm [resolvable:$true] %s121
      %s123 = sshll.u32 [#allocation7], 4
      %s124 = int_to_ptr.vmem [resolvable:$true] %s123
      %126 = dma.hbm_to_vmem [thread:$0]  %s122, 128, %s124, [#allocation6]
    $region13: #{call.1} parent=1 // pred_fallthru
      _
    // Predicated region
    $region14: #{call.1} parent=1 // pred_check
      _
    $region15: #{call.1} parent=1 // pred_check_branch
      %128 = sbr.rel (0) target = $region17
    $region16: #{call.1} parent=1 // pred_region
      %130 = vsyncadd [#allocation9], 0
      %s132 = sshll.u32 %s7, 4
      %s133 = int_to_ptr.hbm [resolvable:$true] %s132
      %s134 = sshll.u32 [#allocation8], 4
      %s135 = int_to_ptr.vmem [resolvable:$true] %s134
      %137 = dma.hbm_to_vmem [thread:$0]  %s133, 128, %s135, [#allocation9]
    $region17: #{call.1} parent=1 // pred_fallthru
      _
    // Predicated region
    $region18: #{call.1} parent=1 // pred_check
      _
    $region19: #{call.1} parent=1 // pred_check_branch
      %139 = sbr.rel (0) target = $region21
    $region20: #{call.1} parent=1 // pred_region
      %141 = vsyncadd [#allocation9], 0
      %s143 = sshll.u32 %s9, 4
      %s144 = int_to_ptr.hbm [resolvable:$true] %s143
      %s145 = sshll.u32 [#allocation10], 4
      %s146 = int_to_ptr.vmem [resolvable:$true] %s145
      %148 = dma.hbm_to_vmem [thread:$0]  %s144, 128, %s146, [#allocation9]
    $region21: #{call.1} parent=1 // pred_fallthru
      _
    // Predicated region
    $region22: #{call.1} parent=1 // pred_check
      _
    $region23: #{call.1} parent=1 // pred_check_branch
      %150 = sbr.rel (0) target = $region25
    $region24: #{call.1} parent=1 // pred_region
      %152 = vsyncadd [#allocation12], 0
      %s154 = sshll.u32 %s11, 4
      %s155 = int_to_ptr.hbm [resolvable:$true] %s154
      %s156 = sshll.u32 [#allocation11], 4
      %s157 = int_to_ptr.vmem [resolvable:$true] %s156
      %159 = dma.hbm_to_vmem [thread:$0]  %s155, 128, %s157, [#allocation12]
    $region25: #{call.1} parent=1 // pred_fallthru
      _
    // Predicated region
    $region26: #{call.1} parent=1 // pred_check
      _
    $region27: #{call.1} parent=1 // pred_check_branch
      %161 = sbr.rel (0) target = $region29
    $region28: #{call.1} parent=1 // pred_region
      %163 = vsyncadd [#allocation12], 0
      %s165 = sshll.u32 %s13, 4
      %s166 = int_to_ptr.hbm [resolvable:$true] %s165
      %s167 = sshll.u32 [#allocation13], 4
      %s168 = int_to_ptr.vmem [resolvable:$true] %s167
      %170 = dma.hbm_to_vmem [thread:$0]  %s166, 128, %s168, [#allocation12]
    $region29: #{call.1} parent=1 // pred_fallthru
      _
    // Predicated region
    $region30: #{call.1} parent=1 // pred_check
      _
    $region31: #{call.1} parent=1 // pred_check_branch
      %172 = sbr.rel (0) target = $region33
    $region32: #{call.1} parent=1 // pred_region
      %174 = vsyncadd [#allocation15], 0
      %s176 = sshll.u32 %s15, 4
      %s177 = int_to_ptr.hbm [resolvable:$true] %s176
      %s178 = sshll.u32 [#allocation14], 4
      %s179 = int_to_ptr.vmem [resolvable:$true] %s178
      %181 = dma.hbm_to_vmem [thread:$0]  %s177, 128, %s179, [#allocation15]
    $region33: #{call.1} parent=1 // pred_fallthru
      _
    // Predicated region
    $region34: #{call.1} parent=1 // pred_check
      _
    $region35: #{call.1} parent=1 // pred_check_branch
      %183 = sbr.rel (0) target = $region37
    $region36: #{call.1} parent=1 // pred_region
      %185 = vsyncadd [#allocation15], 0
      %s187 = sshll.u32 %s17, 4
      %s188 = int_to_ptr.hbm [resolvable:$true] %s187
      %s189 = sshll.u32 [#allocation16], 4
      %s190 = int_to_ptr.vmem [resolvable:$true] %s189
      %192 = dma.hbm_to_vmem [thread:$0]  %s188, 128, %s190, [#allocation15]
    $region37: #{call.1} parent=1 // pred_fallthru
      _
    // Predicated region
    $region38: #{call.1} parent=1 // pred_check
      _
    $region39: #{call.1} parent=1 // pred_check_branch
      %194 = sbr.rel (0) target = $region41
    $region40: #{call.1} parent=1 // pred_region
      %196 = vsyncadd [#allocation18], 0
      %s198 = sshll.u32 %s19, 4
      %s199 = int_to_ptr.hbm [resolvable:$true] %s198
      %s200 = sshll.u32 [#allocation17], 4
      %s201 = int_to_ptr.vmem [resolvable:$true] %s200
      %203 = dma.hbm_to_vmem [thread:$0]  %s199, 128, %s201, [#allocation18]
    $region41: #{call.1} parent=1 // pred_fallthru
      _
    // Predicated region
    $region42: #{call.1} parent=1 // pred_check
      _
    $region43: #{call.1} parent=1 // pred_check_branch
      %205 = sbr.rel (0) target = $region45
    $region44: #{call.1} parent=1 // pred_region
      %207 = vsyncadd [#allocation18], 0
      %s209 = sshll.u32 %s21, 4
      %s210 = int_to_ptr.hbm [resolvable:$true] %s209
      %s211 = sshll.u32 [#allocation19], 4
      %s212 = int_to_ptr.vmem [resolvable:$true] %s211
      %214 = dma.hbm_to_vmem [thread:$0]  %s210, 128, %s212, [#allocation18]
    $region45: #{call.1} parent=1 // pred_fallthru
      _
    // Predicated region
    $region46: #{call.1} parent=1 // pred_check
      _
    $region47: #{call.1} parent=1 // pred_check_branch
      %216 = sbr.rel (0) target = $region49
    $region48: #{call.1} parent=1 // pred_region
      %218 = vsyncadd [#allocation21], 0
      %s220 = sshll.u32 %s23, 4
      %s221 = int_to_ptr.hbm [resolvable:$true] %s220
      %s222 = sshll.u32 [#allocation20], 4
      %s223 = int_to_ptr.vmem [resolvable:$true] %s222
      %225 = dma.hbm_to_vmem [thread:$0]  %s221, 64, %s223, [#allocation21]
    $region49: #{call.1} parent=1 // pred_fallthru
      _
    // Predicated region
    $region50: #{call.1} parent=1 // pred_check
      _
    $region51: #{call.1} parent=1 // pred_check_branch
      %227 = sbr.rel (0) target = $region53
    $region52: #{call.1} parent=1 // pred_region
      %229 = vsyncadd [#allocation21], 0
      %s231 = sshll.u32 %s25, 4
      %s232 = int_to_ptr.hbm [resolvable:$true] %s231
      %s233 = sshll.u32 [#allocation22], 4
      %s234 = int_to_ptr.vmem [resolvable:$true] %s233
      %236 = dma.hbm_to_vmem [thread:$0]  %s232, 64, %s234, [#allocation21]
    $region53: #{call.1} parent=1 // pred_fallthru
      _
    // Predicated region
    $region54: #{call.1} parent=1 // pred_check
      _
    $region55: #{call.1} parent=1 // pred_check_branch
      %238 = sbr.rel (0) target = $region57
    $region56: #{call.1} parent=1 // pred_region
      %240 = vsyncadd [#allocation24], 0
      %s242 = sshll.u32 %s27, 4
      %s243 = int_to_ptr.hbm [resolvable:$true] %s242
      %s244 = sshll.u32 [#allocation23], 4
      %s245 = int_to_ptr.vmem [resolvable:$true] %s244
      %247 = dma.hbm_to_vmem [thread:$0]  %s243, 32, %s245, [#allocation24]
    $region57: #{call.1} parent=1 // pred_fallthru
      _
    // Predicated region
    $region58: #{call.1} parent=1 // pred_check
      _
    $region59: #{call.1} parent=1 // pred_check_branch
      %249 = sbr.rel (0) target = $region61
    $region60: #{call.1} parent=1 // pred_region
      %251 = vsyncadd [#allocation24], 0
      %s253 = sshll.u32 %s29, 4
      %s254 = int_to_ptr.hbm [resolvable:$true] %s253
      %s255 = sshll.u32 [#allocation25], 4
      %s256 = int_to_ptr.vmem [resolvable:$true] %s255
      %258 = dma.hbm_to_vmem [thread:$0]  %s254, 32, %s256, [#allocation24]
    $region61: #{call.1} parent=1 // pred_fallthru
      _
    // Predicated region
    $region62: #{call.1} parent=1 // pred_check
      _
    $region63: #{call.1} parent=1 // pred_check_branch
      %260 = sbr.rel (0) target = $region65
    $region64: #{call.1} parent=1 // pred_region
      %262 = vsyncadd [#allocation27], 0
      %s264 = sshll.u32 %s31, 4
      %s265 = int_to_ptr.hbm [resolvable:$true] %s264
      %s266 = sshll.u32 [#allocation26], 4
      %s267 = int_to_ptr.vmem [resolvable:$true] %s266
      %269 = dma.hbm_to_vmem [thread:$0]  %s265, 32, %s267, [#allocation27]
    $region65: #{call.1} parent=1 // pred_fallthru
      _
    // Predicated region
    $region66: #{call.1} parent=1 // pred_check
      _
    $region67: #{call.1} parent=1 // pred_check_branch
      %271 = sbr.rel (0) target = $region69
    $region68: #{call.1} parent=1 // pred_region
      %273 = vsyncadd [#allocation27], 0
      %s275 = sshll.u32 %s33, 4
      %s276 = int_to_ptr.hbm [resolvable:$true] %s275
      %s277 = sshll.u32 [#allocation28], 4
      %s278 = int_to_ptr.vmem [resolvable:$true] %s277
      %280 = dma.hbm_to_vmem [thread:$0]  %s276, 32, %s278, [#allocation27]
    $region69: #{call.1} parent=1 // pred_fallthru
      _
    // Predicated region
    $region70: #{call.1} parent=1 // pred_check
      _
    $region71: #{call.1} parent=1 // pred_check_branch
      %282 = sbr.rel (0) target = $region73
    $region72: #{call.1} parent=1 // pred_region
      %284 = vsyncadd [#allocation30], 0
      %s286 = sshll.u32 %s35, 4
      %s287 = int_to_ptr.hbm [resolvable:$true] %s286
      %s288 = sshll.u32 [#allocation29], 4
      %s289 = int_to_ptr.vmem [resolvable:$true] %s288
      %291 = dma.hbm_to_vmem [thread:$0]  %s287, 32, %s289, [#allocation30]
    $region73: #{call.1} parent=1 // pred_fallthru
      _
    // Predicated region
    $region74: #{call.1} parent=1 // pred_check
      _
    $region75: #{call.1} parent=1 // pred_check_branch
      %293 = sbr.rel (0) target = $region77
    $region76: #{call.1} parent=1 // pred_region
      %295 = dma.done [#allocation3], 784
    $region77: #{call.1} parent=1 // pred_fallthru
      _
    // Predicated region
    $region78: #{call.1} parent=1 // pred_check
      _
    $region79: #{call.1} parent=1 // pred_check_branch
      %297 = sbr.rel (0) target = $region81
    $region80: #{call.1} parent=1 // pred_region
      %299 = dma.done [#allocation6], 128
    $region81: #{call.1} parent=1 // pred_fallthru
      _
    // Predicated region
    $region82: #{call.1} parent=1 // pred_check
      _
    $region83: #{call.1} parent=1 // pred_check_branch
      %301 = sbr.rel (0) target = $region85
    $region84: #{call.1} parent=1 // pred_region
      %303 = dma.done [#allocation6], 128
    $region85: #{call.1} parent=1 // pred_fallthru
      _
    // Predicated region
    $region86: #{call.1} parent=1 // pred_check
      _
    $region87: #{call.1} parent=1 // pred_check_branch
      %305 = sbr.rel (0) target = $region89
    $region88: #{call.1} parent=1 // pred_region
      %307 = dma.done [#allocation9], 128
    $region89: #{call.1} parent=1 // pred_fallthru
      _
    // Predicated region
    $region90: #{call.1} parent=1 // pred_check
      _
    $region91: #{call.1} parent=1 // pred_check_branch
      %309 = sbr.rel (0) target = $region93
    $region92: #{call.1} parent=1 // pred_region
      %311 = dma.done [#allocation9], 128
    $region93: #{call.1} parent=1 // pred_fallthru
      _
    // Predicated region
    $region94: #{call.1} parent=1 // pred_check
      _
    $region95: #{call.1} parent=1 // pred_check_branch
      %313 = sbr.rel (0) target = $region97
    $region96: #{call.1} parent=1 // pred_region
      %315 = dma.done [#allocation12], 128
    $region97: #{call.1} parent=1 // pred_fallthru
      _
    // Predicated region
    $region98: #{call.1} parent=1 // pred_check
      _
    $region99: #{call.1} parent=1 // pred_check_branch
      %317 = sbr.rel (0) target = $region101
    $region100: #{call.1} parent=1 // pred_region
      %319 = dma.done [#allocation12], 128
    $region101: #{call.1} parent=1 // pred_fallthru
      _
    // Predicated region
    $region102: #{call.1} parent=1 // pred_check
      _
    $region103: #{call.1} parent=1 // pred_check_branch
      %321 = sbr.rel (0) target = $region105
    $region104: #{call.1} parent=1 // pred_region
      %323 = dma.done [#allocation15], 128
    $region105: #{call.1} parent=1 // pred_fallthru
      _
    // Predicated region
    $region106: #{call.1} parent=1 // pred_check
      _
    $region107: #{call.1} parent=1 // pred_check_branch
      %325 = sbr.rel (0) target = $region109
    $region108: #{call.1} parent=1 // pred_region
      %327 = dma.done [#allocation15], 128
    $region109: #{call.1} parent=1 // pred_fallthru
      _
    // Predicated region
    $region110: #{call.1} parent=1 // pred_check
      _
    $region111: #{call.1} parent=1 // pred_check_branch
      %329 = sbr.rel (0) target = $region113
    $region112: #{call.1} parent=1 // pred_region
      %331 = dma.done [#allocation18], 128
    $region113: #{call.1} parent=1 // pred_fallthru
      _
    // Predicated region
    $region114: #{call.1} parent=1 // pred_check
      _
    $region115: #{call.1} parent=1 // pred_check_branch
      %333 = sbr.rel (0) target = $region117
    $region116: #{call.1} parent=1 // pred_region
      %335 = dma.done [#allocation18], 128
    $region117: #{call.1} parent=1 // pred_fallthru
      _
    // Predicated region
    $region118: #{call.1} parent=1 // pred_check
      _
    $region119: #{call.1} parent=1 // pred_check_branch
      %337 = sbr.rel (0) target = $region121
    $region120: #{call.1} parent=1 // pred_region
      %339 = dma.done [#allocation21], 64
    $region121: #{call.1} parent=1 // pred_fallthru
      _
    // Predicated region
    $region122: #{call.1} parent=1 // pred_check
      _
    $region123: #{call.1} parent=1 // pred_check_branch
      %341 = sbr.rel (0) target = $region125
    $region124: #{call.1} parent=1 // pred_region
      %343 = dma.done [#allocation21], 64
    $region125: #{call.1} parent=1 // pred_fallthru
      _
    // Predicated region
    $region126: #{call.1} parent=1 // pred_check
      _
    $region127: #{call.1} parent=1 // pred_check_branch
      %345 = sbr.rel (0) target = $region129
    $region128: #{call.1} parent=1 // pred_region
      %347 = dma.done [#allocation24], 32
    $region129: #{call.1} parent=1 // pred_fallthru
      _
    // Predicated region
    $region130: #{call.1} parent=1 // pred_check
      _
    $region131: #{call.1} parent=1 // pred_check_branch
      %349 = sbr.rel (0) target = $region133
    $region132: #{call.1} parent=1 // pred_region
      %351 = dma.done [#allocation24], 32
    $region133: #{call.1} parent=1 // pred_fallthru
      _
    // Predicated region
    $region134: #{call.1} parent=1 // pred_check
      _
    $region135: #{call.1} parent=1 // pred_check_branch
      %353 = sbr.rel (0) target = $region137
    $region136: #{call.1} parent=1 // pred_region
      %355 = dma.done [#allocation27], 32
    $region137: #{call.1} parent=1 // pred_fallthru
      _
    // Predicated region
    $region138: #{call.1} parent=1 // pred_check
      _
    $region139: #{call.1} parent=1 // pred_check_branch
      %357 = sbr.rel (0) target = $region141
    $region140: #{call.1} parent=1 // pred_region
      %359 = dma.done [#allocation27], 32
    $region141: #{call.1} parent=1 // pred_fallthru
      _
    // Predicated region
    $region142: #{call.1} parent=1 // pred_check
      _
    $region143: #{call.1} parent=1 // pred_check_branch
      %361 = sbr.rel (0) target = $region145
    $region144: #{call.1} parent=1 // pred_region
      %363 = dma.done [#allocation30], 32
    $region145: #{call.1} parent=1 // pred_fallthru
      _
    %v364 = vld [vmem:[#allocation5] sm:$0xff]
    %v365 = vld [vmem:[#allocation2] sm:$0xf]
    %v367 = vperm.slane %v365, 0
    %v368 = vperm.slane %v365, 1
    %v369 = vperm.slane %v365, 2
    %v370 = vperm.slane %v365, 3
    %v371 = vrot.slane %v368, 6
    %v372 = vrot.slane %v369, 4
    %v373 = vrot.slane %v370, 2
    %vm374 = vcmask 1041408
    %v375 = vsel %vm374, %v367, %v371
    %vm376 = vcmask 1045508
    %v377 = vsel %vm376, %v372, %v373
    %vm378 = vcmask 1043456
    %v379 = vsel %vm378, %v375, %v377
    %v381 = vadd.f32 %v364, %v379
    %382 = vst [vmem:[#allocation31] sm:$0xff] %v381
    %v383 = vld [vmem:[#allocation7] sm:$0xff]
    %v384 = vld [vmem:[#allocation2 + $0x4] sm:$0xf]
    %v386 = vperm.slane %v384, 0
    %v387 = vperm.slane %v384, 1
    %v388 = vperm.slane %v384, 2
    %v389 = vperm.slane %v384, 3
    %v390 = vrot.slane %v387, 6
    %v391 = vrot.slane %v388, 4
    %v392 = vrot.slane %v389, 2
    %v393 = vsel %vm374, %v386, %v390
    %v394 = vsel %vm376, %v391, %v392
    %v395 = vsel %vm378, %v393, %v394
    %v397 = vadd.f32 %v383, %v395
    %398 = vst [vmem:[#allocation32] sm:$0xff] %v397
    %v399 = vld [vmem:[#allocation8] sm:$0xff]
    %v400 = vld [vmem:[#allocation2 + $0x8] sm:$0xf]
    %v402 = vperm.slane %v400, 0
    %v403 = vperm.slane %v400, 1
    %v404 = vperm.slane %v400, 2
    %v405 = vperm.slane %v400, 3
    %v406 = vrot.slane %v403, 6
    %v407 = vrot.slane %v404, 4
    %v408 = vrot.slane %v405, 2
    %v409 = vsel %vm374, %v402, %v406
    %v410 = vsel %vm376, %v407, %v408
    %v411 = vsel %vm378, %v409, %v410
    %v413 = vadd.f32 %v399, %v411
    %414 = vst [vmem:[#allocation34] sm:$0xff] %v413
    %v415 = vld [vmem:[#allocation10] sm:$0xff]
    %v416 = vld [vmem:[#allocation2 + $0xc] sm:$0xf]
    %v418 = vperm.slane %v416, 0
    %v419 = vperm.slane %v416, 1
    %v420 = vperm.slane %v416, 2
    %v421 = vperm.slane %v416, 3
    %v422 = vrot.slane %v419, 6
    %v423 = vrot.slane %v420, 4
    %v424 = vrot.slane %v421, 2
    %v425 = vsel %vm374, %v418, %v422
    %v426 = vsel %vm376, %v423, %v424
    %v427 = vsel %vm378, %v425, %v426
    %v429 = vadd.f32 %v415, %v427
    %430 = vst [vmem:[#allocation35] sm:$0xff] %v429
    %v431 = vld [vmem:[#allocation11] sm:$0xff]
    %v432 = vld [vmem:[#allocation2 + $0x10] sm:$0xf]
    %v434 = vperm.slane %v432, 0
    %v435 = vperm.slane %v432, 1
    %v436 = vperm.slane %v432, 2
    %v437 = vperm.slane %v432, 3
    %v438 = vrot.slane %v435, 6
    %v439 = vrot.slane %v436, 4
    %v440 = vrot.slane %v437, 2
    %v441 = vsel %vm374, %v434, %v438
    %v442 = vsel %vm376, %v439, %v440
    %v443 = vsel %vm378, %v441, %v442
    %v445 = vadd.f32 %v431, %v443
    %446 = vst [vmem:[#allocation37] sm:$0xff] %v445
    %v447 = vld [vmem:[#allocation13] sm:$0xff]
    %v448 = vld [vmem:[#allocation2 + $0x14] sm:$0xf]
    %v450 = vperm.slane %v448, 0
    %v451 = vperm.slane %v448, 1
    %v452 = vperm.slane %v448, 2
    %v453 = vperm.slane %v448, 3
    %v454 = vrot.slane %v451, 6
    %v455 = vrot.slane %v452, 4
    %v456 = vrot.slane %v453, 2
    %v457 = vsel %vm374, %v450, %v454
    %v458 = vsel %vm376, %v455, %v456
    %v459 = vsel %vm378, %v457, %v458
    %v461 = vadd.f32 %v447, %v459
    %462 = vst [vmem:[#allocation38] sm:$0xff] %v461
    %v463 = vld [vmem:[#allocation14] sm:$0xff]
    %v464 = vld [vmem:[#allocation2 + $0x18] sm:$0xf]
    %v466 = vperm.slane %v464, 0
    %v467 = vperm.slane %v464, 1
    %v468 = vperm.slane %v464, 2
    %v469 = vperm.slane %v464, 3
    %v470 = vrot.slane %v467, 6
    %v471 = vrot.slane %v468, 4
    %v472 = vrot.slane %v469, 2
    %v473 = vsel %vm374, %v466, %v470
    %v474 = vsel %vm376, %v471, %v472
    %v475 = vsel %vm378, %v473, %v474
    %v477 = vadd.f32 %v463, %v475
    %478 = vst [vmem:[#allocation40] sm:$0xff] %v477
    %v479 = vld [vmem:[#allocation16] sm:$0xff]
    %v480 = vld [vmem:[#allocation2 + $0x1c] sm:$0xf]
    %v482 = vperm.slane %v480, 0
    %v483 = vperm.slane %v480, 1
    %v484 = vperm.slane %v480, 2
    %v485 = vperm.slane %v480, 3
    %v486 = vrot.slane %v483, 6
    %v487 = vrot.slane %v484, 4
    %v488 = vrot.slane %v485, 2
    %v489 = vsel %vm374, %v482, %v486
    %v490 = vsel %vm376, %v487, %v488
    %v491 = vsel %vm378, %v489, %v490
    %v493 = vadd.f32 %v479, %v491
    %494 = vst [vmem:[#allocation41] sm:$0xff] %v493
    %v495 = vld [vmem:[#allocation17] sm:$0xff]
    %v496 = vld [vmem:[#allocation2 + $0x20] sm:$0xf]
    %v498 = vperm.slane %v496, 0
    %v499 = vperm.slane %v496, 1
    %v500 = vperm.slane %v496, 2
    %v501 = vperm.slane %v496, 3
    %v502 = vrot.slane %v499, 6
    %v503 = vrot.slane %v500, 4
    %v504 = vrot.slane %v501, 2
    %v505 = vsel %vm374, %v498, %v502
    %v506 = vsel %vm376, %v503, %v504
    %v507 = vsel %vm378, %v505, %v506
    %v509 = vadd.f32 %v495, %v507
    %510 = vst [vmem:[#allocation43] sm:$0xff] %v509
    %v511 = vld [vmem:[#allocation19] sm:$0xff]
    %v512 = vld [vmem:[#allocation2 + $0x24] sm:$0xf]
    %v514 = vperm.slane %v512, 0
    %v515 = vperm.slane %v512, 1
    %v516 = vperm.slane %v512, 2
    %v517 = vperm.slane %v512, 3
    %v518 = vrot.slane %v515, 6
    %v519 = vrot.slane %v516, 4
    %v520 = vrot.slane %v517, 2
    %v521 = vsel %vm374, %v514, %v518
    %v522 = vsel %vm376, %v519, %v520
    %v523 = vsel %vm378, %v521, %v522
    %v525 = vadd.f32 %v511, %v523
    %526 = vst [vmem:[#allocation44] sm:$0xff] %v525
    %v527 = vld [vmem:[#allocation20] sm:$0xf]
    %v528 = vld [vmem:[#allocation2 + $0x28] sm:$0x3]
    %v530 = vperm.slane %v528, 0
    %v531 = vperm.slane %v528, 1
    %v532 = vrot.slane %v531, 6
    %v533 = vsel %vm374, %v530, %v532
    %v535 = vadd.f32 %v527, %v533
    %536 = vst [vmem:[#allocation46] sm:$0xf] %v535
    %v537 = vld [vmem:[#allocation22] sm:$0xf]
    %v538 = vld [vmem:[#allocation2 + $0x2a] sm:$0x3]
    %v540 = vperm.slane %v538, 0
    %v541 = vperm.slane %v538, 1
    %v542 = vrot.slane %v541, 6
    %v543 = vsel %vm374, %v540, %v542
    %v545 = vadd.f32 %v537, %v543
    %546 = vst [vmem:[#allocation47] sm:$0xf] %v545
    %v547 = vld [vmem:[#allocation23] sm:$0x3]
    %v548 = vld [vmem:[#allocation2 + $0x2c] sm:$0x1]
    %v550 = vperm.slane %v548, 0
    %v552 = vadd.f32 %v547, %v550
    %553 = vst [vmem:[#allocation49] sm:$0x3] %v552
    %v554 = vld [vmem:[#allocation25] sm:$0x3]
    %v555 = vld [vmem:[#allocation2 + $0x2d] sm:$0x1]
    %v557 = vperm.slane %v555, 0
    %v559 = vadd.f32 %v554, %v557
    %560 = vst [vmem:[#allocation50] sm:$0x3] %v559
    %v561 = vld [vmem:[#allocation26] sm:$0x3]
    %v562 = vld [vmem:[#allocation2 + $0x2e] sm:$0x1]
    %v564 = vperm.slane %v562, 0
    %v566 = vadd.f32 %v561, %v564
    %vm567 = vcmask 517120
    %568 = vst.msk [vmem:[#allocation52] sm:$0x3] %vm567, %v566
    %v569 = vld [vmem:[#allocation28] sm:$0x3]
    %v570 = vld [vmem:[#allocation2 + $0x2f] sm:$0x1]
    %v572 = vperm.slane %v570, 0
    %v574 = vadd.f32 %v569, %v572
    %575 = vst.msk [vmem:[#allocation53] sm:$0x3] %vm567, %v574
    %v576 = vld [vmem:[#allocation29] sm:$0x3]
    %v577 = vld [vmem:[#allocation2 + $0x30] sm:$0x1]
    %v579 = vperm.slane %v577, 0
    %v581 = vadd.f32 %v576, %v579
    %vm582 = vcmask 254976
    %583 = vst.msk [vmem:[#allocation55] sm:$0x3] %vm582, %v581
    // Predicated region
    $region146: #{call.1} parent=1 // pred_check
      _
    $region147: #{call.1} parent=1 // pred_check_branch
      %585 = sbr.rel (0) target = $region149
    $region148: #{call.1} parent=1 // pred_region
      %587 = vsyncadd [#allocation4], 0
      %s589 = sshll.u32 [#allocation31], 4
      %s590 = int_to_ptr.vmem [resolvable:$true] %s589
      %s591 = sshll.u32 %s37, 4
      %s592 = int_to_ptr.hbm [resolvable:$true] %s591
      %594 = dma.vmem_to_hbm [thread:$0]  %s590, 128, %s592, [#allocation4]
    $region149: #{call.1} parent=1 // pred_fallthru
      _
    // Predicated region
    $region150: #{call.1} parent=1 // pred_check
      _
    $region151: #{call.1} parent=1 // pred_check_branch
      %596 = sbr.rel (0) target = $region153
    $region152: #{call.1} parent=1 // pred_region
      %598 = vsyncadd [#allocation33], 0
      %s600 = sshll.u32 [#allocation32], 4
      %s601 = int_to_ptr.vmem [resolvable:$true] %s600
      %s602 = sshll.u32 %s39, 4
      %s603 = int_to_ptr.hbm [resolvable:$true] %s602
      %605 = dma.vmem_to_hbm [thread:$0]  %s601, 128, %s603, [#allocation33]
    $region153: #{call.1} parent=1 // pred_fallthru
      _
    // Predicated region
    $region154: #{call.1} parent=1 // pred_check
      _
    $region155: #{call.1} parent=1 // pred_check_branch
      %607 = sbr.rel (0) target = $region157
    $region156: #{call.1} parent=1 // pred_region
      %609 = vsyncadd [#allocation33], 0
      %s611 = sshll.u32 [#allocation34], 4
      %s612 = int_to_ptr.vmem [resolvable:$true] %s611
      %s613 = sshll.u32 %s41, 4
      %s614 = int_to_ptr.hbm [resolvable:$true] %s613
      %616 = dma.vmem_to_hbm [thread:$0]  %s612, 128, %s614, [#allocation33]
    $region157: #{call.1} parent=1 // pred_fallthru
      _
    // Predicated region
    $region158: #{call.1} parent=1 // pred_check
      _
    $region159: #{call.1} parent=1 // pred_check_branch
      %618 = sbr.rel (0) target = $region161
    $region160: #{call.1} parent=1 // pred_region
      %620 = vsyncadd [#allocation36], 0
      %s622 = sshll.u32 [#allocation35], 4
      %s623 = int_to_ptr.vmem [resolvable:$true] %s622
      %s624 = sshll.u32 %s43, 4
      %s625 = int_to_ptr.hbm [resolvable:$true] %s624
      %627 = dma.vmem_to_hbm [thread:$0]  %s623, 128, %s625, [#allocation36]
    $region161: #{call.1} parent=1 // pred_fallthru
      _
    // Predicated region
    $region162: #{call.1} parent=1 // pred_check
      _
    $region163: #{call.1} parent=1 // pred_check_branch
      %629 = sbr.rel (0) target = $region165
    $region164: #{call.1} parent=1 // pred_region
      %631 = vsyncadd [#allocation36], 0
      %s633 = sshll.u32 [#allocation37], 4
      %s634 = int_to_ptr.vmem [resolvable:$true] %s633
      %s635 = sshll.u32 %s45, 4
      %s636 = int_to_ptr.hbm [resolvable:$true] %s635
      %638 = dma.vmem_to_hbm [thread:$0]  %s634, 128, %s636, [#allocation36]
    $region165: #{call.1} parent=1 // pred_fallthru
      _
    // Predicated region
    $region166: #{call.1} parent=1 // pred_check
      _
    $region167: #{call.1} parent=1 // pred_check_branch
      %640 = sbr.rel (0) target = $region169
    $region168: #{call.1} parent=1 // pred_region
      %642 = vsyncadd [#allocation39], 0
      %s644 = sshll.u32 [#allocation38], 4
      %s645 = int_to_ptr.vmem [resolvable:$true] %s644
      %s646 = sshll.u32 %s47, 4
      %s647 = int_to_ptr.hbm [resolvable:$true] %s646
      %649 = dma.vmem_to_hbm [thread:$0]  %s645, 128, %s647, [#allocation39]
    $region169: #{call.1} parent=1 // pred_fallthru
      _
    // Predicated region
    $region170: #{call.1} parent=1 // pred_check
      _
    $region171: #{call.1} parent=1 // pred_check_branch
      %651 = sbr.rel (0) target = $region173
    $region172: #{call.1} parent=1 // pred_region
      %653 = vsyncadd [#allocation39], 0
      %s655 = sshll.u32 [#allocation40], 4
      %s656 = int_to_ptr.vmem [resolvable:$true] %s655
      %s657 = sshll.u32 %s49, 4
      %s658 = int_to_ptr.hbm [resolvable:$true] %s657
      %660 = dma.vmem_to_hbm [thread:$0]  %s656, 128, %s658, [#allocation39]
    $region173: #{call.1} parent=1 // pred_fallthru
      _
    // Predicated region
    $region174: #{call.1} parent=1 // pred_check
      _
    $region175: #{call.1} parent=1 // pred_check_branch
      %662 = sbr.rel (0) target = $region177
    $region176: #{call.1} parent=1 // pred_region
      %664 = vsyncadd [#allocation42], 0
      %s666 = sshll.u32 [#allocation41], 4
      %s667 = int_to_ptr.vmem [resolvable:$true] %s666
      %s668 = sshll.u32 %s51, 4
      %s669 = int_to_ptr.hbm [resolvable:$true] %s668
      %671 = dma.vmem_to_hbm [thread:$0]  %s667, 128, %s669, [#allocation42]
    $region177: #{call.1} parent=1 // pred_fallthru
      _
    // Predicated region
    $region178: #{call.1} parent=1 // pred_check
      _
    $region179: #{call.1} parent=1 // pred_check_branch
      %673 = sbr.rel (0) target = $region181
    $region180: #{call.1} parent=1 // pred_region
      %675 = vsyncadd [#allocation42], 0
      %s677 = sshll.u32 [#allocation43], 4
      %s678 = int_to_ptr.vmem [resolvable:$true] %s677
      %s679 = sshll.u32 %s53, 4
      %s680 = int_to_ptr.hbm [resolvable:$true] %s679
      %682 = dma.vmem_to_hbm [thread:$0]  %s678, 128, %s680, [#allocation42]
    $region181: #{call.1} parent=1 // pred_fallthru
      _
    // Predicated region
    $region182: #{call.1} parent=1 // pred_check
      _
    $region183: #{call.1} parent=1 // pred_check_branch
      %684 = sbr.rel (0) target = $region185
    $region184: #{call.1} parent=1 // pred_region
      %686 = vsyncadd [#allocation45], 0
      %s688 = sshll.u32 [#allocation44], 4
      %s689 = int_to_ptr.vmem [resolvable:$true] %s688
      %s690 = sshll.u32 %s55, 4
      %s691 = int_to_ptr.hbm [resolvable:$true] %s690
      %693 = dma.vmem_to_hbm [thread:$0]  %s689, 128, %s691, [#allocation45]
    $region185: #{call.1} parent=1 // pred_fallthru
      _
    // Predicated region
    $region186: #{call.1} parent=1 // pred_check
      _
    $region187: #{call.1} parent=1 // pred_check_branch
      %695 = sbr.rel (0) target = $region189
    $region188: #{call.1} parent=1 // pred_region
      %697 = vsyncadd [#allocation45], 0
      %s699 = sshll.u32 [#allocation46], 4
      %s700 = int_to_ptr.vmem [resolvable:$true] %s699
      %s701 = sshll.u32 %s57, 4
      %s702 = int_to_ptr.hbm [resolvable:$true] %s701
      %704 = dma.vmem_to_hbm [thread:$0]  %s700, 64, %s702, [#allocation45]
    $region189: #{call.1} parent=1 // pred_fallthru
      _
    // Predicated region
    $region190: #{call.1} parent=1 // pred_check
      _
    $region191: #{call.1} parent=1 // pred_check_branch
      %706 = sbr.rel (0) target = $region193
    $region192: #{call.1} parent=1 // pred_region
      %708 = vsyncadd [#allocation48], 0
      %s710 = sshll.u32 [#allocation47], 4
      %s711 = int_to_ptr.vmem [resolvable:$true] %s710
      %s712 = sshll.u32 %s59, 4
      %s713 = int_to_ptr.hbm [resolvable:$true] %s712
      %715 = dma.vmem_to_hbm [thread:$0]  %s711, 64, %s713, [#allocation48]
    $region193: #{call.1} parent=1 // pred_fallthru
      _
    // Predicated region
    $region194: #{call.1} parent=1 // pred_check
      _
    $region195: #{call.1} parent=1 // pred_check_branch
      %717 = sbr.rel (0) target = $region197
    $region196: #{call.1} parent=1 // pred_region
      %719 = vsyncadd [#allocation48], 0
      %s721 = sshll.u32 [#allocation49], 4
      %s722 = int_to_ptr.vmem [resolvable:$true] %s721
      %s723 = sshll.u32 %s61, 4
      %s724 = int_to_ptr.hbm [resolvable:$true] %s723
      %726 = dma.vmem_to_hbm [thread:$0]  %s722, 32, %s724, [#allocation48]
    $region197: #{call.1} parent=1 // pred_fallthru
      _
    // Predicated region
    $region198: #{call.1} parent=1 // pred_check
      _
    $region199: #{call.1} parent=1 // pred_check_branch
      %728 = sbr.rel (0) target = $region201
    $region200: #{call.1} parent=1 // pred_region
      %730 = vsyncadd [#allocation51], 0
      %s732 = sshll.u32 [#allocation50], 4
      %s733 = int_to_ptr.vmem [resolvable:$true] %s732
      %s734 = sshll.u32 %s63, 4
      %s735 = int_to_ptr.hbm [resolvable:$true] %s734
      %737 = dma.vmem_to_hbm [thread:$0]  %s733, 32, %s735, [#allocation51]
    $region201: #{call.1} parent=1 // pred_fallthru
      _
    // Predicated region
    $region202: #{call.1} parent=1 // pred_check
      _
    $region203: #{call.1} parent=1 // pred_check_branch
      %739 = sbr.rel (0) target = $region205
    $region204: #{call.1} parent=1 // pred_region
      %741 = vsyncadd [#allocation51], 0
      %s743 = sshll.u32 [#allocation52], 4
      %s744 = int_to_ptr.vmem [resolvable:$true] %s743
      %s745 = sshll.u32 %s65, 4
      %s746 = int_to_ptr.hbm [resolvable:$true] %s745
      %748 = dma.vmem_to_hbm [thread:$0]  %s744, 32, %s746, [#allocation51]
    $region205: #{call.1} parent=1 // pred_fallthru
      _
    // Predicated region
    $region206: #{call.1} parent=1 // pred_check
      _
    $region207: #{call.1} parent=1 // pred_check_branch
      %750 = sbr.rel (0) target = $region209
    $region208: #{call.1} parent=1 // pred_region
      %752 = vsyncadd [#allocation54], 0
      %s754 = sshll.u32 [#allocation53], 4
      %s755 = int_to_ptr.vmem [resolvable:$true] %s754
      %s756 = sshll.u32 %s67, 4
      %s757 = int_to_ptr.hbm [resolvable:$true] %s756
      %759 = dma.vmem_to_hbm [thread:$0]  %s755, 32, %s757, [#allocation54]
    $region209: #{call.1} parent=1 // pred_fallthru
      _
    // Predicated region
    $region210: #{call.1} parent=1 // pred_check
      _
    $region211: #{call.1} parent=1 // pred_check_branch
      %761 = sbr.rel (0) target = $region213
    $region212: #{call.1} parent=1 // pred_region
      %763 = vsyncadd [#allocation54], 0
      %s765 = sshll.u32 [#allocation55], 4
      %s766 = int_to_ptr.vmem [resolvable:$true] %s765
      %s767 = sshll.u32 %s69, 4
      %s768 = int_to_ptr.hbm [resolvable:$true] %s767
      %770 = dma.vmem_to_hbm [thread:$0]  %s766, 32, %s768, [#allocation54]
    $region213: #{call.1} parent=1 // pred_fallthru
      _
    // Predicated region
    $region214: #{call.1} parent=1 // pred_check
      _
    $region215: #{call.1} parent=1 // pred_check_branch
      %772 = sbr.rel (0) target = $region217
    $region216: #{call.1} parent=1 // pred_region
      %774 = dma.done [#allocation4], 128
    $region217: #{call.1} parent=1 // pred_fallthru
      _
    // Predicated region
    $region218: #{call.1} parent=1 // pred_check
      _
    $region219: #{call.1} parent=1 // pred_check_branch
      %776 = sbr.rel (0) target = $region221
    $region220: #{call.1} parent=1 // pred_region
      %778 = dma.done [#allocation33], 128
    $region221: #{call.1} parent=1 // pred_fallthru
      _
    // Predicated region
    $region222: #{call.1} parent=1 // pred_check
      _
    $region223: #{call.1} parent=1 // pred_check_branch
      %780 = sbr.rel (0) target = $region225
    $region224: #{call.1} parent=1 // pred_region
      %782 = dma.done [#allocation33], 128
    $region225: #{call.1} parent=1 // pred_fallthru
      _
    // Predicated region
    $region226: #{call.1} parent=1 // pred_check
      _
    $region227: #{call.1} parent=1 // pred_check_branch
      %784 = sbr.rel (0) target = $region229
    $region228: #{call.1} parent=1 // pred_region
      %786 = dma.done [#allocation36], 128
    $region229: #{call.1} parent=1 // pred_fallthru
      _
    // Predicated region
    $region230: #{call.1} parent=1 // pred_check
      _
    $region231: #{call.1} parent=1 // pred_check_branch
      %788 = sbr.rel (0) target = $region233
    $region232: #{call.1} parent=1 // pred_region
      %790 = dma.done [#allocation36], 128
    $region233: #{call.1} parent=1 // pred_fallthru
      _
    // Predicated region
    $region234: #{call.1} parent=1 // pred_check
      _
    $region235: #{call.1} parent=1 // pred_check_branch
      %792 = sbr.rel (0) target = $region237
    $region236: #{call.1} parent=1 // pred_region
      %794 = dma.done [#allocation39], 128
    $region237: #{call.1} parent=1 // pred_fallthru
      _
    // Predicated region
    $region238: #{call.1} parent=1 // pred_check
      _
    $region239: #{call.1} parent=1 // pred_check_branch
      %796 = sbr.rel (0) target = $region241
    $region240: #{call.1} parent=1 // pred_region
      %798 = dma.done [#allocation39], 128
    $region241: #{call.1} parent=1 // pred_fallthru
      _
    // Predicated region
    $region242: #{call.1} parent=1 // pred_check
      _
    $region243: #{call.1} parent=1 // pred_check_branch
      %800 = sbr.rel (0) target = $region245
    $region244: #{call.1} parent=1 // pred_region
      %802 = dma.done [#allocation42], 128
    $region245: #{call.1} parent=1 // pred_fallthru
      _
    // Predicated region
    $region246: #{call.1} parent=1 // pred_check
      _
    $region247: #{call.1} parent=1 // pred_check_branch
      %804 = sbr.rel (0) target = $region249
    $region248: #{call.1} parent=1 // pred_region
      %806 = dma.done [#allocation42], 128
    $region249: #{call.1} parent=1 // pred_fallthru
      _
    // Predicated region
    $region250: #{call.1} parent=1 // pred_check
      _
    $region251: #{call.1} parent=1 // pred_check_branch
      %808 = sbr.rel (0) target = $region253
    $region252: #{call.1} parent=1 // pred_region
      %810 = dma.done [#allocation45], 128
    $region253: #{call.1} parent=1 // pred_fallthru
      _
    // Predicated region
    $region254: #{call.1} parent=1 // pred_check
      _
    $region255: #{call.1} parent=1 // pred_check_branch
      %812 = sbr.rel (0) target = $region257
    $region256: #{call.1} parent=1 // pred_region
      %814 = dma.done [#allocation45], 64
    $region257: #{call.1} parent=1 // pred_fallthru
      _
    // Predicated region
    $region258: #{call.1} parent=1 // pred_check
      _
    $region259: #{call.1} parent=1 // pred_check_branch
      %816 = sbr.rel (0) target = $region261
    $region260: #{call.1} parent=1 // pred_region
      %818 = dma.done [#allocation48], 64
    $region261: #{call.1} parent=1 // pred_fallthru
      _
    // Predicated region
    $region262: #{call.1} parent=1 // pred_check
      _
    $region263: #{call.1} parent=1 // pred_check_branch
      %820 = sbr.rel (0) target = $region265
    $region264: #{call.1} parent=1 // pred_region
      %822 = dma.done [#allocation48], 32
    $region265: #{call.1} parent=1 // pred_fallthru
      _
    // Predicated region
    $region266: #{call.1} parent=1 // pred_check
      _
    $region267: #{call.1} parent=1 // pred_check_branch
      %824 = sbr.rel (0) target = $region269
    $region268: #{call.1} parent=1 // pred_region
      %826 = dma.done [#allocation51], 32
    $region269: #{call.1} parent=1 // pred_fallthru
      _
    // Predicated region
    $region270: #{call.1} parent=1 // pred_check
      _
    $region271: #{call.1} parent=1 // pred_check_branch
      %828 = sbr.rel (0) target = $region273
    $region272: #{call.1} parent=1 // pred_region
      %830 = dma.done [#allocation51], 32
    $region273: #{call.1} parent=1 // pred_fallthru
      _
    // Predicated region
    $region274: #{call.1} parent=1 // pred_check
      _
    $region275: #{call.1} parent=1 // pred_check_branch
      %832 = sbr.rel (0) target = $region277
    $region276: #{call.1} parent=1 // pred_region
      %834 = dma.done [#allocation54], 32
    $region277: #{call.1} parent=1 // pred_fallthru
      _
    // Predicated region
    $region278: #{call.1} parent=1 // pred_check
      _
    $region279: #{call.1} parent=1 // pred_check_branch
      %836 = sbr.rel (0) target = $region281
    $region280: #{call.1} parent=1 // pred_region
      %838 = dma.done [#allocation54], 32
    $region281: #{call.1} parent=1 // pred_fallthru
      _
    %839 = vsyncpa [#allocation3], 1
    %840 = vsyncpa [#allocation6], 1
    %841 = vsyncpa [#allocation9], 1
    %842 = vsyncpa [#allocation12], 1
    %843 = vsyncpa [#allocation15], 1
    %844 = vsyncpa [#allocation18], 1
    %845 = vsyncpa [#allocation21], 1
    %846 = vsyncpa [#allocation24], 1
    %847 = vsyncpa [#allocation27], 1
    %848 = vsyncpa [#allocation30], 1
    %849 = vsyncpa [#allocation4], 1
    %850 = vsyncpa [#allocation33], 1
    %851 = vsyncpa [#allocation36], 1
    %852 = vsyncpa [#allocation39], 1
    %853 = vsyncpa [#allocation42], 1
    %854 = vsyncpa [#allocation45], 1
    %855 = vsyncpa [#allocation48], 1
    %856 = vsyncpa [#allocation51], 1
    %857 = vsyncpa [#allocation54], 1

</llo_original>
